<compile_context>
chip_gen: v6e
topology: v6e:2x2x1
jax: 0.10.0
libtpu: 0.0.40
codegen_flags: <defaults>
</compile_context>

<pallas_src>
import functools

import jax
import jax.numpy as jnp
from jax import lax
from jax.experimental import pallas as pl
from jax.experimental.pallas import tpu as pltpu

EPS = 1e-8
LANE = 128
CHUNK = 32           # rows per inner-loop step: 4 f32 vregs per operand
TILE_ROWS = 1024     # rows per DMA tile (1024 x 128 f32 = 512 KiB per input)


def _ial_partial_kernel(pred_ref, true_ref, out_ref, *,
                        tile_rows, chunk, rows_total):
    """Per-tile partials: out_ref[0] = (4,128) lane-vectors of
    [sum(pos_loss), sum(neg_loss), num_pos, num_neg]."""
    i = pl.program_id(0)
    n_chunks = tile_rows // chunk
    needs_edge_mask = (rows_total % tile_rows) != 0  # static Python bool

    def run(masked):
        def body(c, carry):
            acc_p, acc_n, cnt_p, cnt_n = carry
            r0 = pl.multiple_of(c * chunk, chunk)
            x = pred_ref[pl.ds(r0, chunk), :].astype(jnp.float32)
            t = true_ref[pl.ds(r0, chunk), :].astype(jnp.float32)

            pos = t > 0.0
            neg = t == 0.0
            if masked:
                # Only the (possibly overhanging) last tile pays for this.
                row = lax.broadcasted_iota(jnp.int32, (chunk, 1), 0)
                valid = (i * tile_rows + c * chunk + row) < rows_total
                pos = jnp.logical_and(pos, valid)
                neg = jnp.logical_and(neg, valid)

            # --- one exp, one divide, one log per element ---
            e = jnp.exp(-jnp.abs(x))                 # exp(-|x|), in (0, 1]
            one_plus_e = 1.0 + e
            s = jnp.where(x >= 0.0, 1.0, e)          # stable-sigmoid numerator
            em = jnp.where(x > 0.0, e, 1.0)          # exp(-max(x, 0))
            # pos: (s + EPS*(1+e))/(1+e) == sigmoid(x) + EPS   (~1 ulp)
            # neg: (1+e)/(em+EPS)  ->  log == -log(em+EPS) + log(1+e)
            num = jnp.where(pos, s + EPS * one_plus_e, one_plus_e)
            den = jnp.where(pos, one_plus_e, em + EPS)
            val = jnp.where(pos, -t, 1.0) * jnp.log(num / den)

            def fold(v):  # (chunk,128) -> (8,128) via whole-vreg VPU adds
                return v.reshape(chunk // 8, 8, LANE).sum(axis=0)

            # where-selects (not multiply-masks) keep stale-row NaNs out.
            return (acc_p + fold(jnp.where(pos, val, 0.0)),
                    acc_n + fold(jnp.where(neg, val, 0.0)),
                    cnt_p + fold(pos.astype(jnp.float32)),
                    cnt_n + fold(neg.astype(jnp.float32)))

        zero = jnp.zeros((8, LANE), jnp.float32)
        acc_p, acc_n, cnt_p, cnt_n = lax.fori_loop(
            0, n_chunks, body, (zero, zero, zero, zero))

        # Fold sublanes on the otherwise-idle XLU -> 2 KiB writeback per tile.
        out_ref[0] = jnp.concatenate(
            [jnp.sum(v, axis=0, keepdims=True)
             for v in (acc_p, acc_n, cnt_p, cnt_n)], axis=0)

    if needs_edge_mask:
        last = pl.num_programs(0) - 1

        @pl.when(i == last)
        def _():
            run(masked=True)

        @pl.when(i != last)
        def _():
            run(masked=False)
    else:
        run(masked=False)


def _sublane_multiple(dtype):
    return {4: 8, 2: 16, 1: 32}.get(jnp.dtype(dtype).itemsize, 8)


def ial_loss(y_pred, y_true, *, tile_rows=TILE_ROWS):
    """Pallas TPU implementation of IALLoss.forward. Returns a 0-d f32 scalar."""
    assert y_pred.shape == y_true.shape
    n = y_pred.size

    # Free reshapes; keep native dtype (no extra HBM pass for cast/pad).
    pred_flat = y_pred.reshape(-1)
    true_flat = y_true.reshape(-1)

    rem = n % LANE
    if rem:
        # TODO(synk): rare fallback when numel % 128 != 0 -- pads (<=127 elems)
        # with a copy; label pads are -1 so they land in neither pos nor neg.
        pad = LANE - rem
        pred_flat = jnp.concatenate(
            [pred_flat, jnp.zeros((pad,), pred_flat.dtype)])
        true_flat = jnp.concatenate(
            [true_flat, jnp.full((pad,), -1, true_flat.dtype)])

    rows = pred_flat.size // LANE
    pred2d = pred_flat.reshape(rows, LANE)
    true2d = true_flat.reshape(rows, LANE)

    if rows >= CHUNK:
        tr_cap = max(CHUNK, (int(tile_rows) // CHUNK) * CHUNK)
        # Multiple of CHUNK (covers f32/bf16/int8 sublane packing), <= rows,
        # and small enough that realistic inputs get >= 2 tiles (v7x 2 TCs).
        tr = min(tr_cap,
                 (rows // CHUNK) * CHUNK,
                 -(-rows // (2 * CHUNK)) * CHUNK)
        chunk = CHUNK
    else:
        sub = max(_sublane_multiple(pred2d.dtype),
                  _sublane_multiple(true2d.dtype))
        tr = -(-rows // sub) * sub   # one tiny tile
        chunk = tr
    num_tiles = -(-rows // tr)

    kernel = functools.partial(_ial_partial_kernel,
                               tile_rows=tr, chunk=chunk, rows_total=rows)

    partials = pl.pallas_call(
        kernel,
        out_shape=jax.ShapeDtypeStruct((num_tiles, 4, LANE), jnp.float32),
        grid_spec=pltpu.PrefetchScalarGridSpec(
            num_scalar_prefetch=0,
            grid=(num_tiles,),
            in_specs=[
                pl.BlockSpec((tr, LANE), lambda i: (i, 0)),
                pl.BlockSpec((tr, LANE), lambda i: (i, 0)),
            ],
            out_specs=pl.BlockSpec((1, 4, LANE), lambda i: (i, 0, 0)),
        ),
        compiler_params=pltpu.CompilerParams(
            dimension_semantics=("parallel",),        # megacore-shardable
            vmem_limit_bytes=32 * 1024 * 1024,        # explicit (v5e default=16MiB)
        ),
    )(pred2d, true2d)

    # Tiny final combine (num_tiles * 2 KiB) + divides in plain JAX.
    sums = jnp.sum(partials, axis=(0, 2))            # (4,)
    sum_pos, sum_neg, n_pos, n_neg = sums[0], sums[1], sums[2], sums[3]
    loss = jnp.where(n_pos > 0.0, sum_pos / jnp.maximum(n_pos, 1.0), 0.0)
    loss = loss + jnp.where(n_neg > 0.0, sum_neg / jnp.maximum(n_neg, 1.0), 0.0)
    return loss


def ial_loss_reference(y_pred, y_true):
    """Pure-JAX reference mirroring the PyTorch forward exactly."""
    x = y_pred.astype(jnp.float32)
    t = y_true.astype(jnp.float32)
    pos = t > 0.0
    neg = t == 0.0
    pos_loss = -t * jnp.log(jax.nn.sigmoid(x) + EPS)
    neg_loss = (-jnp.log(jnp.exp(-jnp.maximum(x, 0.0)) + EPS)
                + jnp.log(1.0 + jnp.exp(-jnp.abs(x))))
    sum_pos = jnp.sum(jnp.where(pos, pos_loss, 0.0))
    sum_neg = jnp.sum(jnp.where(neg, neg_loss, 0.0))
    n_pos = jnp.sum(pos.astype(jnp.float32))
    n_neg = jnp.sum(neg.astype(jnp.float32))
    loss = jnp.where(n_pos > 0.0, sum_pos / n_pos, 0.0)
    loss = loss + jnp.where(n_neg > 0.0, sum_neg / n_neg, 0.0)
    return loss


def _make_inputs(key, shape, dtype=jnp.float32):
    k_pred, k_true, k_mask = jax.random.split(key, 3)
    y_pred = (jax.random.normal(k_pred, shape, dtype=jnp.float32) * 2.0).astype(dtype)
    probs = jax.random.uniform(k_true, shape, dtype=jnp.float32)
    mask = jax.random.bernoulli(k_mask, 0.5, shape).astype(jnp.float32)
    y_true = (probs * mask).astype(dtype)
    return y_pred, y_true


if __name__ == "__main__":
    key = jax.random.PRNGKey(0)
    cases = [
        ((2, 4, 16, 16), jnp.float32),   # spec shape: tiny single-tile path
        ((2, 4, 64, 64), jnp.float32),   # chunked loop, 2 parallel tiles
        ((2, 3, 40, 40), jnp.float32),   # 75 rows: masked edge tile
        ((1, 3, 10, 13), jnp.float32),   # numel % 128 != 0: lane-pad path
        ((2, 4, 64, 64), jnp.bfloat16),  # packed dtype through the DMA
    ]
    for idx, (shape, dtype) in enumerate(cases):
        key, sub = jax.random.split(key)
        y_pred, y_true = _make_inputs(sub, shape, dtype)
        loss = jax.block_until_ready(ial_loss(y_pred, y_true))
        ref = jax.block_until_ready(ial_loss_reference(y_pred, y_true))
        assert jnp.allclose(loss, ref, rtol=1e-5, atol=1e-5), (idx, shape, loss, ref)

    print("KERNEL_OK")
</pallas_src>

<mosaic_0001>
module attributes {stable_mosaic.version = 11 : i64} {
  func.func @_ial_partial_kernel(%arg0: i32, %arg1: memref<16x128xf32, #tpu.memory_space<vmem>>, %arg2: memref<16x128xf32, #tpu.memory_space<vmem>>, %arg3: memref<1x4x128xf32, #tpu.memory_space<vmem>>) attributes {dimension_semantics = [#tpu.dimension_semantics<parallel>], iteration_bounds = array<i64: 1>, scalar_prefetch = 0 : i64, scratch_operands = 0 : i64, tpu.core_type = #tpu.core_type<tc>, window_params = [{transform_indices = @transform_0, window_bounds = array<i64: 16, 128>}, {transform_indices = @transform_1, window_bounds = array<i64: 16, 128>}, {transform_indices = @transform_2, window_bounds = array<i64: 1, 4, 128>}]} {
    %cst = arith.constant 0.000000e+00 : f32
    %0 = vector.broadcast %cst : f32 to vector<8x128xf32>
    %c0_i32 = arith.constant 0 : i32
    %c16_i32 = arith.constant 16 : i32
    %1 = arith.muli %c0_i32, %c16_i32 : i32
    %2 = tpu.assume_multiple %1, 16 : i32
    %3 = arith.index_cast %2 : i32 to index
    %c0 = arith.constant 0 : index
    %4 = vector.load %arg1[%3, %c0] : memref<16x128xf32, #tpu.memory_space<vmem>>, vector<16x128xf32>
    %5 = arith.index_cast %2 : i32 to index
    %c0_0 = arith.constant 0 : index
    %6 = vector.load %arg2[%5, %c0_0] : memref<16x128xf32, #tpu.memory_space<vmem>>, vector<16x128xf32>
    %cst_1 = arith.constant 0.000000e+00 : f32
    %7 = vector.broadcast %cst_1 : f32 to vector<16x128xf32>
    %8 = arith.cmpf ogt, %6, %7 : vector<16x128xf32>
    %cst_2 = arith.constant 0.000000e+00 : f32
    %9 = vector.broadcast %cst_2 : f32 to vector<16x128xf32>
    %10 = arith.cmpf oeq, %6, %9 : vector<16x128xf32>
    %11 = math.absf %4 : vector<16x128xf32>
    %cst_3 = arith.constant 0.000000e+00 : f32
    %12 = vector.broadcast %cst_3 : f32 to vector<16x128xf32>
    %13 = arith.subf %12, %11 : vector<16x128xf32>
    %14 = math.exp %13 : vector<16x128xf32>
    %cst_4 = arith.constant 1.000000e+00 : f32
    %15 = vector.broadcast %cst_4 : f32 to vector<16x128xf32>
    %16 = arith.addf %15, %14 : vector<16x128xf32>
    %cst_5 = arith.constant 0.000000e+00 : f32
    %17 = vector.broadcast %cst_5 : f32 to vector<16x128xf32>
    %18 = arith.cmpf oge, %4, %17 : vector<16x128xf32>
    %cst_6 = arith.constant 1.000000e+00 : f32
    %19 = vector.broadcast %cst_6 : f32 to vector<16x128xf32>
    %20 = arith.select %18, %19, %14 : vector<16x128xi1>, vector<16x128xf32>
    %cst_7 = arith.constant 0.000000e+00 : f32
    %21 = vector.broadcast %cst_7 : f32 to vector<16x128xf32>
    %22 = arith.cmpf ogt, %4, %21 : vector<16x128xf32>
    %cst_8 = arith.constant 1.000000e+00 : f32
    %23 = vector.broadcast %cst_8 : f32 to vector<16x128xf32>
    %24 = arith.select %22, %14, %23 : vector<16x128xi1>, vector<16x128xf32>
    %cst_9 = arith.constant 9.99999993E-9 : f32
    %25 = vector.broadcast %cst_9 : f32 to vector<16x128xf32>
    %26 = arith.mulf %25, %16 : vector<16x128xf32>
    %27 = arith.addf %20, %26 : vector<16x128xf32>
    %28 = arith.select %8, %27, %16 : vector<16x128xi1>, vector<16x128xf32>
    %cst_10 = arith.constant 9.99999993E-9 : f32
    %29 = vector.broadcast %cst_10 : f32 to vector<16x128xf32>
    %30 = arith.addf %24, %29 : vector<16x128xf32>
    %31 = arith.select %8, %16, %30 : vector<16x128xi1>, vector<16x128xf32>
    %cst_11 = arith.constant 0.000000e+00 : f32
    %32 = vector.broadcast %cst_11 : f32 to vector<16x128xf32>
    %33 = arith.subf %32, %6 : vector<16x128xf32>
    %cst_12 = arith.constant 1.000000e+00 : f32
    %34 = vector.broadcast %cst_12 : f32 to vector<16x128xf32>
    %35 = arith.select %8, %33, %34 : vector<16x128xi1>, vector<16x128xf32>
    %36 = arith.divf %28, %31 : vector<16x128xf32>
    %37 = math.log %36 : vector<16x128xf32>
    %38 = arith.mulf %35, %37 : vector<16x128xf32>
    %cst_13 = arith.constant 0.000000e+00 : f32
    %39 = vector.broadcast %cst_13 : f32 to vector<16x128xf32>
    %40 = arith.select %8, %38, %39 : vector<16x128xi1>, vector<16x128xf32>
    %41 = vector.shape_cast %40 : vector<16x128xf32> to vector<2x8x128xf32>
    %cst_14 = arith.constant dense<0.000000e+00> : vector<8x128xf32>
    %42 = vector.multi_reduction <add>, %41, %cst_14 [0] : vector<2x8x128xf32> to vector<8x128xf32>
    %43 = arith.addf %0, %42 : vector<8x128xf32>
    %cst_15 = arith.constant 0.000000e+00 : f32
    %44 = vector.broadcast %cst_15 : f32 to vector<16x128xf32>
    %45 = arith.select %10, %38, %44 : vector<16x128xi1>, vector<16x128xf32>
    %46 = vector.shape_cast %45 : vector<16x128xf32> to vector<2x8x128xf32>
    %cst_16 = arith.constant dense<0.000000e+00> : vector<8x128xf32>
    %47 = vector.multi_reduction <add>, %46, %cst_16 [0] : vector<2x8x128xf32> to vector<8x128xf32>
    %48 = arith.addf %0, %47 : vector<8x128xf32>
    %49 = arith.extui %8 : vector<16x128xi1> to vector<16x128xi32>
    %50 = arith.sitofp %49 : vector<16x128xi32> to vector<16x128xf32>
    %51 = vector.shape_cast %50 : vector<16x128xf32> to vector<2x8x128xf32>
    %cst_17 = arith.constant dense<0.000000e+00> : vector<8x128xf32>
    %52 = vector.multi_reduction <add>, %51, %cst_17 [0] : vector<2x8x128xf32> to vector<8x128xf32>
    %53 = arith.addf %0, %52 : vector<8x128xf32>
    %54 = arith.extui %10 : vector<16x128xi1> to vector<16x128xi32>
    %55 = arith.sitofp %54 : vector<16x128xi32> to vector<16x128xf32>
    %56 = vector.shape_cast %55 : vector<16x128xf32> to vector<2x8x128xf32>
    %cst_18 = arith.constant dense<0.000000e+00> : vector<8x128xf32>
    %57 = vector.multi_reduction <add>, %56, %cst_18 [0] : vector<2x8x128xf32> to vector<8x128xf32>
    %58 = arith.addf %0, %57 : vector<8x128xf32>
    %c1_i32 = arith.constant 1 : i32
    %cst_19 = arith.constant dense<0.000000e+00> : vector<128xf32>
    %59 = vector.multi_reduction <add>, %43, %cst_19 [0] : vector<8x128xf32> to vector<128xf32>
    %60 = vector.shape_cast %59 : vector<128xf32> to vector<1x128xf32>
    %cst_20 = arith.constant dense<0.000000e+00> : vector<128xf32>
    %61 = vector.multi_reduction <add>, %48, %cst_20 [0] : vector<8x128xf32> to vector<128xf32>
    %62 = vector.shape_cast %61 : vector<128xf32> to vector<1x128xf32>
    %cst_21 = arith.constant dense<0.000000e+00> : vector<128xf32>
    %63 = vector.multi_reduction <add>, %53, %cst_21 [0] : vector<8x128xf32> to vector<128xf32>
    %64 = vector.shape_cast %63 : vector<128xf32> to vector<1x128xf32>
    %cst_22 = arith.constant dense<0.000000e+00> : vector<128xf32>
    %65 = vector.multi_reduction <add>, %58, %cst_22 [0] : vector<8x128xf32> to vector<128xf32>
    %66 = vector.shape_cast %65 : vector<128xf32> to vector<1x128xf32>
    %67 = tpu.concatenate %60, %62, %64, %66 in 0 : vector<1x128xf32>, vector<1x128xf32>, vector<1x128xf32>, vector<1x128xf32> -> vector<4x128xf32>
    %c0_23 = arith.constant 0 : index
    %c0_24 = arith.constant 0 : index
    %c0_25 = arith.constant 0 : index
    %68 = vector.load %arg3[%c0_23, %c0_24, %c0_25] : memref<1x4x128xf32, #tpu.memory_space<vmem>>, vector<1x4x128xf32>
    %69 = vector.shape_cast %68 : vector<1x4x128xf32> to vector<4x128xf32>
    %70 = vector.shape_cast %67 : vector<4x128xf32> to vector<1x4x128xf32>
    tpu.vector_store %arg3[%c0_23, %c0_24, %c0_25], %70 {strides = array<i32>} : memref<1x4x128xf32, #tpu.memory_space<vmem>>, vector<1x4x128xf32>,
    return
  }
  func.func @transform_0(%arg0: i32) -> (i32, i32) {
    %c0_i32 = arith.constant 0 : i32
    %c0_i32_0 = arith.constant 0 : i32
    return %arg0, %c0_i32 : i32, i32
  }
  func.func @transform_1(%arg0: i32) -> (i32, i32) {
    %c0_i32 = arith.constant 0 : i32
    %c0_i32_0 = arith.constant 0 : i32
    return %arg0, %c0_i32 : i32, i32
  }
  func.func @transform_2(%arg0: i32) -> (i32, i32, i32) {
    %c0_i32 = arith.constant 0 : i32
    %c0_i32_0 = arith.constant 0 : i32
    %c0_i32_1 = arith.constant 0 : i32
    return %arg0, %c0_i32, %c0_i32_0 : i32, i32, i32
  }
}

</mosaic_0001>

<llo_original>
// kernel: tpu_custom_call.1
$region0: #{tpu_custom_call.1}
  #allocation0 [shape = 'u32[]', space=smem, size = 0x4, offset = 0x4, fixed_abs, tag = 'smem constant byte address 0x4 - core index']
  #allocation1 [shape = 'u32[144,128]{1,0:T(1,128)}', space=vmem, size = 0x12000, scoped, tag = 'internal scratch']
  %s0 = inlined_call_operand.hbm [shape: f32[16,128], index: 0, kind: input, shape index: {}]
  %s1 = inlined_call_operand.hbm [shape: f32[16,128], index: 1, kind: input, shape index: {}]
  %s2 = inlined_call_operand.hbm [shape: f32[1,4,128], index: 2, kind: output, shape index: {}]
  %s3 = sld [smem:[#allocation0]]
  $region26: #{tpu_custom_call.1} parent=0
    _
  %s5 = ssub.s32 1, %s3
  %s6 = scalar_select 0, %s5, %s3
  $region1: #{tpu_custom_call.1} parent=0
    #allocation2 [shape = 'u8[8192]{0}', space=vmem, size = 0x2000, scoped, tag = 'input window, operand 0, single buffered']
    #allocation3 [shape = 's32[1]{0}', space=sflag, size = 0x4, scoped, tag = 'scoped memory for tpu_custom_call.1']
    #allocation4 [shape = 's32[1]{0}', space=sflag, size = 0x4, scoped, tag = 'scoped memory for tpu_custom_call.1']
    #allocation5 [shape = 'u8[8192]{0}', space=vmem, size = 0x2000, scoped, tag = 'input window, operand 1, single buffered']
    #allocation6 [shape = 's32[1]{0}', space=sflag, size = 0x4, scoped, tag = 'scoped memory for tpu_custom_call.1']
    #allocation7 [shape = 'u8[2048]{0}', space=vmem, size = 0x800, scoped, tag = 'output window, operand 0, single buffered']
    %7 = vsyncpa [#allocation3], 0
    %8 = vsyncpa [#allocation6], 0
    %9 = vsyncpa [#allocation4], 0
    // Predicated region
    $region2: #{tpu_custom_call.1} parent=1 // pred_check
      _
    $region3: #{tpu_custom_call.1} parent=1 // pred_check_branch
      %11 = sbr.rel (0) target = $region5
    $region4: #{tpu_custom_call.1} parent=1 // pred_region
      %s13 = ssub.s32 256, 256
      %14 = vsyncadd [#allocation3], %s13
      %s15 = sshll.u32 [#allocation2], 4
      %s16 = int_to_ptr.vmem [resolvable:$true] %s15
      %21 = dma.hbm_to_vmem [thread:$0]  %s0, 256, %s16, [#allocation3], 128, 128, 8
    $region5: #{tpu_custom_call.1} parent=1 // pred_fallthru
      _
    // Predicated region
    $region6: #{tpu_custom_call.1} parent=1 // pred_check
      _
    $region7: #{tpu_custom_call.1} parent=1 // pred_check_branch
      %23 = sbr.rel (0) target = $region9
    $region8: #{tpu_custom_call.1} parent=1 // pred_region
      %s25 = ssub.s32 256, 256
      %26 = vsyncadd [#allocation6], %s25
      %s27 = sshll.u32 [#allocation5], 4
      %s28 = int_to_ptr.vmem [resolvable:$true] %s27
      %33 = dma.hbm_to_vmem [thread:$0]  %s1, 256, %s28, [#allocation6], 128, 128, 8
    $region9: #{tpu_custom_call.1} parent=1 // pred_fallthru
      _
    // Predicated region
    $region10: #{tpu_custom_call.1} parent=1 // pred_check
      _
    $region11: #{tpu_custom_call.1} parent=1 // pred_check_branch
      %35 = sbr.rel (0) target = $region13
    $region12: #{tpu_custom_call.1} parent=1 // pred_region
      %36 = dma.done [#allocation3], 256
    $region13: #{tpu_custom_call.1} parent=1 // pred_fallthru
      _
    // Predicated region
    $region14: #{tpu_custom_call.1} parent=1 // pred_check
      _
    $region15: #{tpu_custom_call.1} parent=1 // pred_check_branch
      %38 = sbr.rel (0) target = $region17
    $region16: #{tpu_custom_call.1} parent=1 // pred_region
      %39 = dma.done [#allocation6], 256
    $region17: #{tpu_custom_call.1} parent=1 // pred_fallthru
      _
    %v40 = vld [vmem:[#allocation2] sm:$0xff]
    %v41 = vld [vmem:[#allocation2 + $0x8] sm:$0xff]
    %v42 = vld [vmem:[#allocation5] sm:$0xff]
    %v43 = vld [vmem:[#allocation5 + $0x8] sm:$0xff]
    %vm44 = vcmp.gt.f32.partialorder %v42, 0.0
    %vm45 = vcmp.gt.f32.partialorder %v43, 0.0
    %vm46 = vcmp.eq.f32.partialorder %v42, 0.0
    %vm47 = vcmp.eq.f32.partialorder %v43, 0.0
    %v48 = vand.u32 2147483647, %v40
    %v49 = vand.u32 2147483647, %v41
    %v50 = vsub.f32 0.0, %v48
    %v51 = vsub.f32 0.0, %v49
    %v52 = vmul.f32 %v50, 1.442695
    %v53 = vpow.pop %v52
    %v54 = vmul.f32 %v51, 1.442695
    %v55 = vpow.pop %v54
    %v56 = vadd.f32 %v53, 1.0
    %v57 = vadd.f32 %v55, 1.0
    %vm58 = vcmp.ge.f32.partialorder %v40, 0.0
    %vm59 = vcmp.ge.f32.partialorder %v41, 0.0
    %v60 = vsel %vm58, 1.0, %v53
    %v61 = vsel %vm59, 1.0, %v55
    %vm62 = vcmp.gt.f32.partialorder %v40, 0.0
    %vm63 = vcmp.gt.f32.partialorder %v41, 0.0
    %v64 = vsel %vm62, %v53, 1.0
    %v65 = vsel %vm63, %v55, 1.0
    %v66 = vmul.f32 %v56, 1e-08
    %v67 = vmul.f32 %v57, 1e-08
    %v68 = vadd.f32 %v60, %v66
    %v69 = vadd.f32 %v61, %v67
    %v70 = vsel %vm44, %v68, %v56
    %v71 = vsel %vm45, %v69, %v57
    %v72 = vadd.f32 %v64, 1e-08
    %v73 = vadd.f32 %v65, 1e-08
    %v74 = vsel %vm44, %v56, %v72
    %v75 = vsel %vm45, %v57, %v73
    %v76 = vsub.f32 0.0, %v42
    %v77 = vsub.f32 0.0, %v43
    %v78 = vsel %vm44, %v76, 1.0
    %v79 = vsel %vm45, %v77, 1.0
    %v80 = vrcp.pop %v74
    %v81 = vmul.f32 %v70, %v80
    %v82 = vrcp.pop %v75
    %v83 = vmul.f32 %v71, %v82
    %v84 = vlog2.pop %v81
    %v85 = vmul.f32 %v84, 0.6931472
    %v86 = vlog2.pop %v83
    %v87 = vmul.f32 %v86, 0.6931472
    %v88 = vmul.f32 %v78, %v85
    %v89 = vmul.f32 %v79, %v87
    %v90 = vsel %vm44, %v88, 0.0
    %v91 = vsel %vm45, %v89, 0.0
    %v92 = vadd.f32 %v90, %v91
    %v93 = vadd.f32 %v92, 0.0
    %v94 = vsel %vm46, %v88, 0.0
    %v95 = vsel %vm47, %v89, 0.0
    %v96 = vadd.f32 %v94, %v95
    %v97 = vadd.f32 %v96, 0.0
    %v98 = vsel %vm44, 1, 0
    %v99 = vsel %vm45, 1, 0
    %v100 = vcvt.s32.f32 %v98
    %v101 = vcvt.s32.f32 %v99
    %v102 = vadd.f32 %v100, %v101
    %v103 = vadd.f32 %v102, 0.0
    %v104 = vsel %vm46, 1, 0
    %v105 = vsel %vm47, 1, 0
    %v106 = vcvt.s32.f32 %v104
    %v107 = vcvt.s32.f32 %v105
    %v108 = vadd.f32 %v106, %v107
    %v109 = vadd.f32 %v108, 0.0
    %v110 = vrot.slane %v93, 4
    %v111 = vadd.f32 %v93, %v110
    %v112 = vrot.slane %v111, 2
    %v113 = vadd.f32 %v111, %v112
    %v114 = vrot.slane %v113, 1
    %v115 = vadd.f32 %v113, %v114
    %v116 = vrot.slane %v97, 4
    %v117 = vadd.f32 %v97, %v116
    %v118 = vrot.slane %v117, 2
    %v119 = vadd.f32 %v117, %v118
    %v120 = vrot.slane %v119, 1
    %v121 = vadd.f32 %v119, %v120
    %v122 = vrot.slane %v103, 4
    %v123 = vadd.f32 %v103, %v122
    %v124 = vrot.slane %v123, 2
    %v125 = vadd.f32 %v123, %v124
    %v126 = vrot.slane %v125, 1
    %v127 = vadd.f32 %v125, %v126
    %v128 = vrot.slane %v109, 4
    %v129 = vadd.f32 %v109, %v128
    %v130 = vrot.slane %v129, 2
    %v131 = vadd.f32 %v129, %v130
    %v132 = vrot.slane %v131, 1
    %v133 = vadd.f32 %v131, %v132
    %vm134 = vcmask 1040384
    %v135 = vsel %vm134, %v115, %v121
    %vm136 = vcmask 1041408
    %v137 = vsel %vm136, %v135, %v127
    %vm138 = vcmask 1042432
    %v139 = vsel %vm138, %v137, %v133
    %140 = vst [vmem:[#allocation7] sm:$0xf] %v139
    // Predicated region
    $region18: #{tpu_custom_call.1} parent=1 // pred_check
      _
    $region19: #{tpu_custom_call.1} parent=1 // pred_check_branch
      %142 = sbr.rel (0) target = $region21
    $region20: #{tpu_custom_call.1} parent=1 // pred_region
      %s144 = ssub.s32 64, 64
      %145 = vsyncadd [#allocation4], %s144
      %s147 = sshll.u32 [#allocation7], 4
      %s148 = int_to_ptr.vmem [resolvable:$true] %s147
      %150 = dma.vmem_to_hbm [thread:$0]  %s148, 64, %s2, [#allocation4]
    $region21: #{tpu_custom_call.1} parent=1 // pred_fallthru
      _
    // Predicated region
    $region22: #{tpu_custom_call.1} parent=1 // pred_check
      _
    $region23: #{tpu_custom_call.1} parent=1 // pred_check_branch
      %152 = sbr.rel (0) target = $region25
    $region24: #{tpu_custom_call.1} parent=1 // pred_region
      %153 = dma.done [#allocation4], 64
    $region25: #{tpu_custom_call.1} parent=1 // pred_fallthru
      _
    %154 = vsyncpa [#allocation3], 1
    %155 = vsyncpa [#allocation6], 1
    %156 = vsyncpa [#allocation4], 1

</llo_original>
